<compile_context>
chip_gen: v7x
topology: tpu7x:2x2x1
jax: 0.10.0
libtpu: 0.0.40
codegen_flags: <defaults>
</compile_context>

<pallas_src>
import functools

import jax
import jax.numpy as jnp
from jax import lax
from jax.experimental import pallas as pl
from jax.experimental.pallas import tpu as pltpu

LANE = 128      # vreg lane width: all feature dims are zero-padded to this
SUBLANE = 8     # f32 sublane granularity (16 for bf16)


def _cdiv(a, b):
    return -(-a // b)


def _round_up(a, b):
    return _cdiv(a, b) * b


def _pad2d(a, rows, cols, fill=0.0):
    r, c = a.shape
    if r == rows and c == cols:
        return a
    return jnp.pad(a, ((0, rows - r), (0, cols - c)), constant_values=fill)


def _vmem_capacity_bytes():
    """Physical VMEM of the attached TPU; conservative (v7x, 64 MiB) fallback."""
    try:
        return int(pltpu.get_tpu_info().vmem_capacity_bytes)
    except Exception:
        return 64 * 1024 * 1024


# --------------------------------------------------------------------------- #
# Kernels
# --------------------------------------------------------------------------- #
def _eval_kernel(*refs, n_layers, compute_dtype):
    """Eval-mode fused MLP.  BN already folded into (W', bias_eff) by the wrapper.

    refs = [x, w_0..w_{L-1}, b_0..b_{L-1}, out]; all feature dims lane-dense.
    """
    L = n_layers
    x_ref = refs[0]
    w_refs = refs[1:1 + L]
    b_refs = refs[1 + L:1 + 2 * L]
    out_ref = refs[1 + 2 * L]

    x = x_ref[...]
    for i in range(L):
        # MXU matmul, f32 accumulation always.
        dot = jnp.dot(x, w_refs[i][...], preferred_element_type=jnp.float32)
        y = dot + b_refs[i][...]
        if i < L - 1:
            x = jnp.maximum(y, 0.0).astype(compute_dtype)   # ReLU, back to MXU dtype
        else:
            x = y                                           # last layer: affine only
    out_ref[...] = x.astype(out_ref.dtype)


def _train_kernel(*refs, n_layers, eps):
    """Training-mode fused MLP with in-kernel batch statistics.

    INVARIANT: the whole batch is resident in one block (grid == (1,)); per-tile
    statistics would otherwise overwrite each other in the (1, D) stat outputs.

    refs = [x, w*L, b*L, gamma*(L-1), beta*(L-1),
            out, bmean_0, bvar_0, ..., bmean_{L-2}, bvar_{L-2}]
    """
    L = n_layers
    nbn = L - 1
    idx = 0
    x_ref = refs[idx]; idx += 1
    w_refs = refs[idx:idx + L]; idx += L
    b_refs = refs[idx:idx + L]; idx += L
    g_refs = refs[idx:idx + nbn]; idx += nbn
    be_refs = refs[idx:idx + nbn]; idx += nbn
    out_ref = refs[idx]; idx += 1
    stat_refs = refs[idx:]

    x = x_ref[...].astype(jnp.float32)
    n = x.shape[0]
    for i in range(L):
        dot = jnp.dot(x, w_refs[i][...], preferred_element_type=jnp.float32)
        y = dot + b_refs[i][...]
        if i < L - 1:
            mean = jnp.mean(y, axis=0, keepdims=True)
            # torch.var default is unbiased (divide by N-1), matching the spec's
            # BatchNormLayer.  N == 1 yields inf/nan exactly like torch (documented,
            # not guarded).
            var = jnp.sum((y - mean) ** 2, axis=0, keepdims=True) / (n - 1)
            stat_refs[2 * i][...] = mean
            stat_refs[2 * i + 1][...] = var
            inv = lax.rsqrt(var + eps)            # EUP slot, ~free
            scale = g_refs[i][...] * inv          # (1, D)
            shift = be_refs[i][...] - mean * scale
            x = jnp.maximum(y * scale + shift, 0.0)
        else:
            x = y
    out_ref[...] = x.astype(out_ref.dtype)


# --------------------------------------------------------------------------- #
# Wrappers
# --------------------------------------------------------------------------- #
def _pick_eval_tile(n, vmem_cap, sublane):
    """Batch tile: big enough to amortize the ~0.35us per-step overhead, small
    enough for the generation's VMEM, and >=2 tiles whenever possible so the
    'parallel' axis actually splits across v7x's two TensorCores."""
    tm_target = 1024 if vmem_cap >= 96 * 1024 * 1024 else 512
    n_aligned = _round_up(n, sublane)
    if n_aligned <= tm_target:
        if n >= 2 * sublane:
            return _round_up(_cdiv(n, 2), sublane)   # at least two tiles
        return n_aligned
    return tm_target


def fused_forward_eval(X, params, *, eps=1e-5, use_bf16=False):
    """Whole-network eval forward in a single pallas_call."""
    weights, biases = params["weights"], params["biases"]
    gammas, betas = params["gamma"], params["beta"]
    rmeans, rvars = params["running_mean"], params["running_var"]
    L = len(weights)
    N, Din = X.shape
    Dlast = weights[-1].shape[1]

    # ---- fold BN completely into the parameters (one-time, batch-independent) ----
    w_fold, b_fold = [], []
    for i in range(L):
        if i < L - 1:
            scale = gammas[i] * lax.rsqrt(rvars[i] + eps)            # (1, Dout)
            w_fold.append(weights[i] * scale)                        # W' = W * scale
            b_fold.append((biases[i] - rmeans[i]) * scale + betas[i])
        else:
            w_fold.append(weights[i])
            b_fold.append(biases[i])

    # ---- lane-dense padding of every feature dim ----
    dims = [Din] + [w.shape[1] for w in weights]
    pdims = [_round_up(d, LANE) for d in dims]
    compute_dtype = jnp.bfloat16 if use_bf16 else jnp.float32
    sublane = 16 if use_bf16 else SUBLANE
    w_pad = [_pad2d(w_fold[i], pdims[i], pdims[i + 1]).astype(compute_dtype)
             for i in range(L)]
    b_pad = [_pad2d(b_fold[i], 1, pdims[i + 1]).astype(jnp.float32)
             for i in range(L)]

    # ---- generation-aware batch tiling: cdiv grid + zero-row padding ----
    vmem_cap = _vmem_capacity_bytes()
    tm = _pick_eval_tile(N, vmem_cap, sublane)
    nb = _cdiv(N, tm)
    n_pad = nb * tm
    x_pad = _pad2d(X, n_pad, pdims[0]).astype(compute_dtype)

    in_specs = [pl.BlockSpec((tm, pdims[0]), lambda i: (i, 0))]
    inputs = [x_pad]
    for w in w_pad:
        in_specs.append(pl.BlockSpec(w.shape, lambda i: (0, 0)))   # resident
        inputs.append(w)
    for b in b_pad:
        in_specs.append(pl.BlockSpec(b.shape, lambda i: (0, 0)))   # resident
        inputs.append(b)

    itemsize = 2 if use_bf16 else 4
    flops = 2 * n_pad * sum(pdims[i] * pdims[i + 1] for i in range(L))
    bytes_accessed = (x_pad.size * itemsize + n_pad * pdims[-1] * 4
                      + sum(w.size * itemsize for w in w_pad)
                      + sum(b.size * 4 for b in b_pad))
    cost = pl.CostEstimate(flops=int(flops), transcendentals=0,
                           bytes_accessed=int(bytes_accessed))

    out = pl.pallas_call(
        functools.partial(_eval_kernel, n_layers=L, compute_dtype=compute_dtype),
        grid=(nb,),
        out_shape=jax.ShapeDtypeStruct((n_pad, pdims[-1]), jnp.float32),
        in_specs=in_specs,
        out_specs=pl.BlockSpec((tm, pdims[-1]), lambda i: (i, 0)),
        compiler_params=pltpu.CompilerParams(
            dimension_semantics=("parallel",),                    # 2-TC split on v7x
            vmem_limit_bytes=int(min(3 * vmem_cap // 4, 100 * 1024 * 1024)),
        ),
        cost_estimate=cost,
    )(*inputs)
    return out[:N, :Dlast]


def fused_forward_train(X, params, *, eps=1e-5):
    """Whole-network training forward; returns (out, batch_means, batch_vars).

    Feature dims are lane-padded; the batch stays whole-resident (grid of 1)
    because the axis-0 statistics need every row in one block (see kernel
    invariant + TODO at top of file)."""
    weights, biases = params["weights"], params["biases"]
    gammas, betas = params["gamma"], params["beta"]
    L = len(weights)
    nbn = L - 1
    N, Din = X.shape
    Dlast = weights[-1].shape[1]

    dims = [Din] + [w.shape[1] for w in weights]
    pdims = [_round_up(d, LANE) for d in dims]
    w_pad = [_pad2d(weights[i], pdims[i], pdims[i + 1]) for i in range(L)]
    b_pad = [_pad2d(biases[i], 1, pdims[i + 1]) for i in range(L)]
    g_pad = [_pad2d(gammas[i], 1, pdims[i + 1]) for i in range(nbn)]
    be_pad = [_pad2d(betas[i], 1, pdims[i + 1]) for i in range(nbn)]
    # No batch-row padding: extra zero rows would corrupt the batch statistics.
    x_pad = _pad2d(X, N, pdims[0])

    inputs = [x_pad] + w_pad + b_pad + g_pad + be_pad
    in_specs = [pl.BlockSpec(a.shape, lambda i: (0, 0)) for a in inputs]

    out_shapes = [jax.ShapeDtypeStruct((N, pdims[-1]), jnp.float32)]
    out_specs = [pl.BlockSpec((N, pdims[-1]), lambda i: (0, 0))]
    for i in range(nbn):
        out_shapes += [jax.ShapeDtypeStruct((1, pdims[i + 1]), jnp.float32)] * 2
        out_specs += [pl.BlockSpec((1, pdims[i + 1]), lambda i: (0, 0))] * 2

    vmem_cap = _vmem_capacity_bytes()
    flops = 2 * N * sum(pdims[i] * pdims[i + 1] for i in range(L))
    bytes_out = sum(s.shape[0] * s.shape[1] * 4 for s in out_shapes)
    bytes_accessed = sum(a.size * 4 for a in inputs) + bytes_out
    cost = pl.CostEstimate(flops=int(flops),
                           transcendentals=int(sum(pdims[i + 1] for i in range(nbn))),
                           bytes_accessed=int(bytes_accessed))

    outs = pl.pallas_call(
        functools.partial(_train_kernel, n_layers=L, eps=eps),
        grid=(1,),
        out_shape=tuple(out_shapes),
        in_specs=in_specs,
        out_specs=tuple(out_specs),
        compiler_params=pltpu.CompilerParams(
            dimension_semantics=("arbitrary",),
            vmem_limit_bytes=int(min(3 * vmem_cap // 4, 100 * 1024 * 1024)),
        ),
        cost_estimate=cost,
    )(*inputs)

    out = outs[0][:, :Dlast]
    d_true = [weights[i].shape[1] for i in range(nbn)]
    bmeans = [outs[1 + 2 * i][:, :d_true[i]] for i in range(nbn)]
    bvars = [outs[2 + 2 * i][:, :d_true[i]] for i in range(nbn)]
    return out, bmeans, bvars


def pt_deep_with_batchnorm_forward(X, params, training=False, momentum=0.9,
                                   eps=1e-5, use_bf16=False):
    """Forward pass matching PTDeepWithBatchNorm.forward.

    Eval mode returns the output.  Training mode returns (output, new_params)
    where new_params carries the EMA-updated running_mean/running_var (the
    stateful side effect of BatchNormLayer.forward, done functionally here)."""
    if not training:
        return fused_forward_eval(X, params, eps=eps, use_bf16=use_bf16)
    out, bmeans, bvars = fused_forward_train(X, params, eps=eps)
    new_params = dict(params)
    new_params["running_mean"] = [momentum * rm + (1.0 - momentum) * bm
                                  for rm, bm in zip(params["running_mean"], bmeans)]
    new_params["running_var"] = [momentum * rv + (1.0 - momentum) * bv
                                 for rv, bv in zip(params["running_var"], bvars)]
    return out, new_params


# --------------------------------------------------------------------------- #
# Init + pure-JAX reference
# --------------------------------------------------------------------------- #
def init_params(config, key):
    """Same shapes as the PyTorch module's __init__.  BN params / running stats
    are given non-trivial values (as if after some training) so the eval-mode
    BN fold is actually exercised."""
    weights, biases, gammas, betas, r_means, r_vars = [], [], [], [], [], []
    for i in range(len(config) - 1):
        key, kw, kb = jax.random.split(key, 3)
        weights.append(jax.random.normal(kw, (config[i], config[i + 1]), jnp.float32))
        biases.append(jax.random.normal(kb, (1, config[i + 1]), jnp.float32))
    for i in range(len(config) - 2):
        d = config[i + 1]
        key, kg, kbt, km, kv = jax.random.split(key, 5)
        gammas.append(1.0 + 0.1 * jax.random.normal(kg, (1, d), jnp.float32))
        betas.append(0.1 * jax.random.normal(kbt, (1, d), jnp.float32))
        r_means.append(0.5 * jax.random.normal(km, (1, d), jnp.float32))
        r_vars.append(1.0 + 0.5 * jax.random.uniform(kv, (1, d), jnp.float32))
    return dict(weights=weights, biases=biases, gamma=gammas, beta=betas,
                running_mean=r_means, running_var=r_vars)


def reference_forward(X, params, training=False, eps=1e-5, momentum=0.9):
    """Pure-JAX reference mirroring the PyTorch module (incl. EMA update)."""
    n_layers = len(params["weights"])
    new_rm, new_rv = [], []
    h = X
    for i in range(n_layers):
        h = h @ params["weights"][i] + params["biases"][i]
        if i < n_layers - 1:
            if training:
                mean = jnp.mean(h, axis=0, keepdims=True)
                var = jnp.var(h, axis=0, ddof=1, keepdims=True)  # torch.var unbiased
                new_rm.append(momentum * params["running_mean"][i]
                              + (1.0 - momentum) * mean)
                new_rv.append(momentum * params["running_var"][i]
                              + (1.0 - momentum) * var)
            else:
                mean = params["running_mean"][i]
                var = params["running_var"][i]
            h = (h - mean) / jnp.sqrt(var + eps)
            h = params["gamma"][i] * h + params["beta"][i]
            h = jnp.maximum(h, 0.0)
    if training:
        return h, new_rm, new_rv
    return h


if __name__ == "__main__":
    key = jax.random.PRNGKey(0)
    key, kx, kp = jax.random.split(key, 3)

    config = [16, 32, 32, 4]   # input dim, two hidden layers, output classes
    N = 8                      # batch size

    X = jax.random.normal(kx, (N, config[0]), jnp.float32)
    params = init_params(config, kp)

    # ---- eval path (training=False), module's default forward call ----
    out = jax.block_until_ready(
        pt_deep_with_batchnorm_forward(X, params, training=False))
    ref = reference_forward(X, params, training=False)
    assert out.shape == (N, config[-1])
    assert jnp.allclose(out, ref, rtol=2e-3, atol=2e-3), "mismatch vs reference (eval)"

    # ---- eval path, bf16 matmul (f32 accumulation); loose tolerance ----
    out_bf16 = jax.block_until_ready(
        pt_deep_with_batchnorm_forward(X, params, training=False, use_bf16=True))
    assert out_bf16.shape == (N, config[-1])
    assert jnp.all(jnp.isfinite(out_bf16))
    assert jnp.allclose(out_bf16, ref, rtol=5e-2, atol=2.0), "mismatch (bf16 eval)"

    # ---- training path (in-kernel batch stats + EMA running-stat update) ----
    out_tr, new_params = pt_deep_with_batchnorm_forward(X, params, training=True)
    out_tr = jax.block_until_ready(out_tr)
    ref_tr, ref_rm, ref_rv = reference_forward(X, params, training=True)
    assert jnp.allclose(out_tr, ref_tr, rtol=2e-3, atol=2e-3), "mismatch (train)"
    for a, b in zip(new_params["running_mean"], ref_rm):
        assert jnp.allclose(a, b, rtol=2e-3, atol=2e-3), "running_mean EMA mismatch"
    for a, b in zip(new_params["running_var"], ref_rv):
        assert jnp.allclose(a, b, rtol=2e-3, atol=2e-3), "running_var EMA mismatch"

    print("KERNEL_OK")
</pallas_src>

<mosaic_0001>
module attributes {stable_mosaic.version = 11 : i64} {
  func.func @_eval_kernel(%arg0: i32, %arg1: memref<8x128xf32, #tpu.memory_space<vmem>>, %arg2: memref<128x128xf32, #tpu.memory_space<vmem>>, %arg3: memref<128x128xf32, #tpu.memory_space<vmem>>, %arg4: memref<128x128xf32, #tpu.memory_space<vmem>>, %arg5: memref<1x128xf32, #tpu.memory_space<vmem>>, %arg6: memref<1x128xf32, #tpu.memory_space<vmem>>, %arg7: memref<1x128xf32, #tpu.memory_space<vmem>>, %arg8: memref<8x128xf32, #tpu.memory_space<vmem>>) attributes {dimension_semantics = [#tpu.dimension_semantics<parallel>], iteration_bounds = array<i64: 1>, scalar_prefetch = 0 : i64, scratch_operands = 0 : i64, tpu.core_type = #tpu.core_type<tc>, window_params = [{transform_indices = @transform_0, window_bounds = array<i64: 8, 128>}, {pipeline_mode = #tpu.pipeline_mode<synchronous>, transform_indices = @transform_1, window_bounds = array<i64: 128, 128>}, {pipeline_mode = #tpu.pipeline_mode<synchronous>, transform_indices = @transform_2, window_bounds = array<i64: 128, 128>}, {pipeline_mode = #tpu.pipeline_mode<synchronous>, transform_indices = @transform_3, window_bounds = array<i64: 128, 128>}, {pipeline_mode = #tpu.pipeline_mode<synchronous>, transform_indices = @transform_4, window_bounds = array<i64: 1, 128>}, {pipeline_mode = #tpu.pipeline_mode<synchronous>, transform_indices = @transform_5, window_bounds = array<i64: 1, 128>}, {pipeline_mode = #tpu.pipeline_mode<synchronous>, transform_indices = @transform_6, window_bounds = array<i64: 1, 128>}, {transform_indices = @transform_7, window_bounds = array<i64: 8, 128>}]} {
    %c0 = arith.constant 0 : index
    %c0_0 = arith.constant 0 : index
    %0 = vector.load %arg1[%c0, %c0_0] : memref<8x128xf32, #tpu.memory_space<vmem>>, vector<8x128xf32>
    %c0_1 = arith.constant 0 : index
    %c0_2 = arith.constant 0 : index
    %1 = vector.load %arg2[%c0_1, %c0_2] : memref<128x128xf32, #tpu.memory_space<vmem>>, vector<128x128xf32>
    %cst = arith.constant dense<0.000000e+00> : vector<8x128xf32>
    %2 = tpu.matmul %0, %1, %cst {dimension_numbers = #tpu.dot_dimension_numbers<[1], [0], [0], [1], [0, 0, 1, 1], [], []>} : vector<8x128xf32>, vector<128x128xf32>, vector<8x128xf32> -> vector<8x128xf32>
    %c0_3 = arith.constant 0 : index
    %c0_4 = arith.constant 0 : index
    %3 = vector.load %arg5[%c0_3, %c0_4] : memref<1x128xf32, #tpu.memory_space<vmem>>, vector<1x128xf32>
    %4 = vector.broadcast %3 : vector<1x128xf32> to vector<8x128xf32>
    %5 = arith.addf %2, %4 : vector<8x128xf32>
    %cst_5 = arith.constant 0.000000e+00 : f32
    %6 = vector.broadcast %cst_5 : f32 to vector<8x128xf32>
    %7 = arith.maximumf %5, %6 : vector<8x128xf32>
    %c0_6 = arith.constant 0 : index
    %c0_7 = arith.constant 0 : index
    %8 = vector.load %arg3[%c0_6, %c0_7] : memref<128x128xf32, #tpu.memory_space<vmem>>, vector<128x128xf32>
    %cst_8 = arith.constant dense<0.000000e+00> : vector<8x128xf32>
    %9 = tpu.matmul %7, %8, %cst_8 {dimension_numbers = #tpu.dot_dimension_numbers<[1], [0], [0], [1], [0, 0, 1, 1], [], []>} : vector<8x128xf32>, vector<128x128xf32>, vector<8x128xf32> -> vector<8x128xf32>
    %c0_9 = arith.constant 0 : index
    %c0_10 = arith.constant 0 : index
    %10 = vector.load %arg6[%c0_9, %c0_10] : memref<1x128xf32, #tpu.memory_space<vmem>>, vector<1x128xf32>
    %11 = vector.broadcast %10 : vector<1x128xf32> to vector<8x128xf32>
    %12 = arith.addf %9, %11 : vector<8x128xf32>
    %cst_11 = arith.constant 0.000000e+00 : f32
    %13 = vector.broadcast %cst_11 : f32 to vector<8x128xf32>
    %14 = arith.maximumf %12, %13 : vector<8x128xf32>
    %c0_12 = arith.constant 0 : index
    %c0_13 = arith.constant 0 : index
    %15 = vector.load %arg4[%c0_12, %c0_13] : memref<128x128xf32, #tpu.memory_space<vmem>>, vector<128x128xf32>
    %cst_14 = arith.constant dense<0.000000e+00> : vector<8x128xf32>
    %16 = tpu.matmul %14, %15, %cst_14 {dimension_numbers = #tpu.dot_dimension_numbers<[1], [0], [0], [1], [0, 0, 1, 1], [], []>} : vector<8x128xf32>, vector<128x128xf32>, vector<8x128xf32> -> vector<8x128xf32>
    %c0_15 = arith.constant 0 : index
    %c0_16 = arith.constant 0 : index
    %17 = vector.load %arg7[%c0_15, %c0_16] : memref<1x128xf32, #tpu.memory_space<vmem>>, vector<1x128xf32>
    %18 = vector.broadcast %17 : vector<1x128xf32> to vector<8x128xf32>
    %19 = arith.addf %16, %18 : vector<8x128xf32>
    %c0_17 = arith.constant 0 : index
    %c0_18 = arith.constant 0 : index
    %20 = vector.load %arg8[%c0_17, %c0_18] : memref<8x128xf32, #tpu.memory_space<vmem>>, vector<8x128xf32>
    tpu.vector_store %arg8[%c0_17, %c0_18], %19 {strides = array<i32>} : memref<8x128xf32, #tpu.memory_space<vmem>>, vector<8x128xf32>,
    return
  }
  func.func @transform_0(%arg0: i32) -> (i32, i32) {
    %c0_i32 = arith.constant 0 : i32
    %c0_i32_0 = arith.constant 0 : i32
    return %arg0, %c0_i32 : i32, i32
  }
  func.func @transform_1(%arg0: i32) -> (i32, i32) {
    %c0_i32 = arith.constant 0 : i32
    %c0_i32_0 = arith.constant 0 : i32
    %c0_i32_1 = arith.constant 0 : i32
    return %c0_i32, %c0_i32_0 : i32, i32
  }
  func.func @transform_2(%arg0: i32) -> (i32, i32) {
    %c0_i32 = arith.constant 0 : i32
    %c0_i32_0 = arith.constant 0 : i32
    %c0_i32_1 = arith.constant 0 : i32
    return %c0_i32, %c0_i32_0 : i32, i32
  }
  func.func @transform_3(%arg0: i32) -> (i32, i32) {
    %c0_i32 = arith.constant 0 : i32
    %c0_i32_0 = arith.constant 0 : i32
    %c0_i32_1 = arith.constant 0 : i32
    return %c0_i32, %c0_i32_0 : i32, i32
  }
  func.func @transform_4(%arg0: i32) -> (i32, i32) {
    %c0_i32 = arith.constant 0 : i32
    %c0_i32_0 = arith.constant 0 : i32
    %c0_i32_1 = arith.constant 0 : i32
    return %c0_i32, %c0_i32_0 : i32, i32
  }
  func.func @transform_5(%arg0: i32) -> (i32, i32) {
    %c0_i32 = arith.constant 0 : i32
    %c0_i32_0 = arith.constant 0 : i32
    %c0_i32_1 = arith.constant 0 : i32
    return %c0_i32, %c0_i32_0 : i32, i32
  }
  func.func @transform_6(%arg0: i32) -> (i32, i32) {
    %c0_i32 = arith.constant 0 : i32
    %c0_i32_0 = arith.constant 0 : i32
    %c0_i32_1 = arith.constant 0 : i32
    return %c0_i32, %c0_i32_0 : i32, i32
  }
  func.func @transform_7(%arg0: i32) -> (i32, i32) {
    %c0_i32 = arith.constant 0 : i32
    %c0_i32_0 = arith.constant 0 : i32
    return %arg0, %c0_i32 : i32, i32
  }
}

</mosaic_0001>

<llo_original>
// kernel: tpu_custom_call.1
$region0: #{tpu_custom_call.1}
  #allocation0 [shape = 'u32[]', space=smem, size = 0x4, offset = 0x4, fixed_abs, tag = 'smem constant byte address 0x4 - core index']
  #allocation1 [shape = 'u32[144,128]{1,0:T(1,128)}', space=vmem, size = 0x12000, scoped, tag = 'internal scratch']
  %s0 = inlined_call_operand.hbm [shape: f32[8,128], index: 0, kind: input, shape index: {}]
  %s1 = inlined_call_operand.hbm [shape: f32[128,128], index: 1, kind: input, shape index: {}]
  %s2 = inlined_call_operand.hbm [shape: f32[128,128], index: 2, kind: input, shape index: {}]
  %s3 = inlined_call_operand.hbm [shape: f32[128,128], index: 3, kind: input, shape index: {}]
  %s4 = inlined_call_operand.vmem [shape: f32[1,128], index: 4, kind: input, shape index: {}]
  %s5 = inlined_call_operand.vmem [shape: f32[1,128], index: 5, kind: input, shape index: {}]
  %s6 = inlined_call_operand.vmem [shape: f32[1,128], index: 6, kind: input, shape index: {}]
  %s7 = inlined_call_operand.hbm [shape: f32[8,128], index: 7, kind: output, shape index: {}]
  %s8 = sld [smem:[#allocation0]]
  $region54: #{tpu_custom_call.1} parent=0
    _
  %s10 = ssub.s32 1, %s8
  %s11 = scalar_select 0, %s10, %s8
  $region1: #{tpu_custom_call.1} parent=0
    #allocation2 [shape = 'u8[4096]{0}', space=vmem, size = 0x1000, scoped, tag = 'input window, operand 0, single buffered']
    #allocation3 [shape = 's32[1]{0}', space=sflag, size = 0x4, scoped, tag = 'scoped memory for tpu_custom_call.1']
    #allocation4 [shape = 's32[1]{0}', space=sflag, size = 0x4, scoped, tag = 'scoped memory for tpu_custom_call.1']
    #allocation5 [shape = 'u8[65536]{0}', space=vmem, size = 0x10000, scoped, tag = 'input window, operand 1, single buffered']
    #allocation6 [shape = 's32[1]{0}', space=sflag, size = 0x4, scoped, tag = 'scoped memory for tpu_custom_call.1']
    #allocation7 [shape = 'u8[65536]{0}', space=vmem, size = 0x10000, scoped, tag = 'input window, operand 2, single buffered']
    #allocation8 [shape = 'u8[65536]{0}', space=vmem, size = 0x10000, scoped, tag = 'input window, operand 3, single buffered']
    #allocation9 [shape = 's32[1]{0}', space=sflag, size = 0x4, scoped, tag = 'scoped memory for tpu_custom_call.1']
    #allocation10 [shape = 'u8[4096]{0}', space=vmem, size = 0x1000, scoped, tag = 'output window, operand 0, single buffered']
    %12 = vsyncpa [#allocation3], 0
    %13 = vsyncpa [#allocation6], 0
    %14 = vsyncpa [#allocation9], 0
    %15 = vsyncpa [#allocation4], 0
    // Predicated region
    $region2: #{tpu_custom_call.1} parent=1 // pred_check
      _
    $region3: #{tpu_custom_call.1} parent=1 // pred_check_branch
      %17 = sbr.rel (0) target = $region5
    $region4: #{tpu_custom_call.1} parent=1 // pred_region
      %s19 = ssub.s32 128, 128
      %20 = vsyncadd [#allocation3], %s19
      %s22 = sshll.u32 [#allocation2], 4
      %s23 = int_to_ptr.vmem [resolvable:$true] %s22
      %25 = dma.hbm_to_vmem [thread:$0]  %s0, 128, %s23, [#allocation3]
    $region5: #{tpu_custom_call.1} parent=1 // pred_fallthru
      _
    // Predicated region
    $region6: #{tpu_custom_call.1} parent=1 // pred_check
      _
    $region7: #{tpu_custom_call.1} parent=1 // pred_check_branch
      %27 = sbr.rel (0) target = $region9
    $region8: #{tpu_custom_call.1} parent=1 // pred_region
      %s29 = ssub.s32 2048, 2048
      %30 = vsyncadd [#allocation6], %s29
      %s31 = sshll.u32 [#allocation5], 4
      %s32 = int_to_ptr.vmem [resolvable:$true] %s31
      %37 = dma.hbm_to_vmem [thread:$0]  %s1, 2048, %s32, [#allocation6], 128, 128, 8
    $region9: #{tpu_custom_call.1} parent=1 // pred_fallthru
      _
    // Predicated region
    $region10: #{tpu_custom_call.1} parent=1 // pred_check
      _
    $region11: #{tpu_custom_call.1} parent=1 // pred_check_branch
      %39 = sbr.rel (0) target = $region13
    $region12: #{tpu_custom_call.1} parent=1 // pred_region
      %s41 = ssub.s32 2048, 2048
      %42 = vsyncadd [#allocation6], %s41
      %s43 = sshll.u32 [#allocation7], 4
      %s44 = int_to_ptr.vmem [resolvable:$true] %s43
      %49 = dma.hbm_to_vmem [thread:$0]  %s2, 2048, %s44, [#allocation6], 128, 128, 8
    $region13: #{tpu_custom_call.1} parent=1 // pred_fallthru
      _
    // Predicated region
    $region14: #{tpu_custom_call.1} parent=1 // pred_check
      _
    $region15: #{tpu_custom_call.1} parent=1 // pred_check_branch
      %51 = sbr.rel (0) target = $region17
    $region16: #{tpu_custom_call.1} parent=1 // pred_region
      %s53 = ssub.s32 2048, 2048
      %54 = vsyncadd [#allocation9], %s53
      %s55 = sshll.u32 [#allocation8], 4
      %s56 = int_to_ptr.vmem [resolvable:$true] %s55
      %61 = dma.hbm_to_vmem [thread:$0]  %s3, 2048, %s56, [#allocation9], 128, 128, 8
    $region17: #{tpu_custom_call.1} parent=1 // pred_fallthru
      _
    // Predicated region
    $region18: #{tpu_custom_call.1} parent=1 // pred_check
      _
    $region19: #{tpu_custom_call.1} parent=1 // pred_check_branch
      %63 = sbr.rel (0) target = $region21
    $region20: #{tpu_custom_call.1} parent=1 // pred_region
      _
    $region21: #{tpu_custom_call.1} parent=1 // pred_fallthru
      _
    // Predicated region
    $region22: #{tpu_custom_call.1} parent=1 // pred_check
      _
    $region23: #{tpu_custom_call.1} parent=1 // pred_check_branch
      %65 = sbr.rel (0) target = $region25
    $region24: #{tpu_custom_call.1} parent=1 // pred_region
      _
    $region25: #{tpu_custom_call.1} parent=1 // pred_fallthru
      _
    // Predicated region
    $region26: #{tpu_custom_call.1} parent=1 // pred_check
      _
    $region27: #{tpu_custom_call.1} parent=1 // pred_check_branch
      %67 = sbr.rel (0) target = $region29
    $region28: #{tpu_custom_call.1} parent=1 // pred_region
      _
    $region29: #{tpu_custom_call.1} parent=1 // pred_fallthru
      _
    // Predicated region
    $region30: #{tpu_custom_call.1} parent=1 // pred_check
      _
    $region31: #{tpu_custom_call.1} parent=1 // pred_check_branch
      %69 = sbr.rel (0) target = $region33
    $region32: #{tpu_custom_call.1} parent=1 // pred_region
      %70 = dma.done [#allocation3], 128
    $region33: #{tpu_custom_call.1} parent=1 // pred_fallthru
      _
    // Predicated region
    $region34: #{tpu_custom_call.1} parent=1 // pred_check
      _
    $region35: #{tpu_custom_call.1} parent=1 // pred_check_branch
      %72 = sbr.rel (0) target = $region37
    $region36: #{tpu_custom_call.1} parent=1 // pred_region
      %73 = dma.done [#allocation6], 2048
    $region37: #{tpu_custom_call.1} parent=1 // pred_fallthru
      _
    // Predicated region
    $region38: #{tpu_custom_call.1} parent=1 // pred_check
      _
    $region39: #{tpu_custom_call.1} parent=1 // pred_check_branch
      %75 = sbr.rel (0) target = $region41
    $region40: #{tpu_custom_call.1} parent=1 // pred_region
      %76 = dma.done [#allocation6], 2048
    $region41: #{tpu_custom_call.1} parent=1 // pred_fallthru
      _
    // Predicated region
    $region42: #{tpu_custom_call.1} parent=1 // pred_check
      _
    $region43: #{tpu_custom_call.1} parent=1 // pred_check_branch
      %78 = sbr.rel (0) target = $region45
    $region44: #{tpu_custom_call.1} parent=1 // pred_region
      %79 = dma.done [#allocation9], 2048
    $region45: #{tpu_custom_call.1} parent=1 // pred_fallthru
      _
    %v80 = vld [vmem:[#allocation2] sm:$0xff]
    %v81 = vld [vmem:[#allocation5] sm:$0xff]
    %v82 = vld [vmem:[#allocation5 + $0x8] sm:$0xff]
    %v83 = vld [vmem:[#allocation5 + $0x10] sm:$0xff]
    %v84 = vld [vmem:[#allocation5 + $0x18] sm:$0xff]
    %v85 = vld [vmem:[#allocation5 + $0x20] sm:$0xff]
    %v86 = vld [vmem:[#allocation5 + $0x28] sm:$0xff]
    %v87 = vld [vmem:[#allocation5 + $0x30] sm:$0xff]
    %v88 = vld [vmem:[#allocation5 + $0x38] sm:$0xff]
    %v89 = vld [vmem:[#allocation5 + $0x40] sm:$0xff]
    %v90 = vld [vmem:[#allocation5 + $0x48] sm:$0xff]
    %v91 = vld [vmem:[#allocation5 + $0x50] sm:$0xff]
    %v92 = vld [vmem:[#allocation5 + $0x58] sm:$0xff]
    %v93 = vld [vmem:[#allocation5 + $0x60] sm:$0xff]
    %v94 = vld [vmem:[#allocation5 + $0x68] sm:$0xff]
    %v95 = vld [vmem:[#allocation5 + $0x70] sm:$0xff]
    %v96 = vld [vmem:[#allocation5 + $0x78] sm:$0xff]
    %v97 = vld [vmem:[%s4] sm:$0x1]
    %v99 = vlaneseq
    %v100 = vshrl.u32 %v99, 7
    %v101 = vsub.s32 0, %v100
    %v102 = vrot.slane %v97, %v101
    %104 = vmatprep.subr.mxu0 0.0
    %105 = vmatpush1.msra.mxu0 %v81
    %106 = vmatprep.subr.mxu0 0.0
    %107 = vmatpush1.msra.mxu0 %v82
    %108 = vmatprep.subr.mxu0 0.0
    %109 = vmatpush1.msra.mxu0 %v83
    %110 = vmatprep.subr.mxu0 0.0
    %111 = vmatpush1.msra.mxu0 %v84
    %112 = vmatprep.subr.mxu0 0.0
    %113 = vmatpush1.msra.mxu0 %v85
    %114 = vmatprep.subr.mxu0 0.0
    %115 = vmatpush1.msra.mxu0 %v86
    %116 = vmatprep.subr.mxu0 0.0
    %117 = vmatpush1.msra.mxu0 %v87
    %118 = vmatprep.subr.mxu0 0.0
    %119 = vmatpush1.msra.mxu0 %v88
    %120 = vmatprep.subr.mxu0 0.0
    %121 = vmatpush1.msra.mxu0 %v89
    %122 = vmatprep.subr.mxu0 0.0
    %123 = vmatpush1.msra.mxu0 %v90
    %124 = vmatprep.subr.mxu0 0.0
    %125 = vmatpush1.msra.mxu0 %v91
    %126 = vmatprep.subr.mxu0 0.0
    %127 = vmatpush1.msra.mxu0 %v92
    %128 = vmatprep.subr.mxu0 0.0
    %129 = vmatpush1.msra.mxu0 %v93
    %130 = vmatprep.subr.mxu0 0.0
    %131 = vmatpush1.msra.mxu0 %v94
    %132 = vmatprep.subr.mxu0 0.0
    %133 = vmatpush1.msra.mxu0 %v95
    %134 = vmatprep.subr.mxu0 0.0
    %135 = vmatpush1.msra.mxu0 %v96
    %136 = vmatprep.subr.mxu0 0.0
    %137 = vmatpush1.msra.mxu0 0.0
    %138 = vmatprep.subr.mxu0 0.0
    %139 = vmatpush1.msra.mxu0 0.0
    %140 = vmatprep.subr.mxu0 0.0
    %141 = vmatpush1.msra.mxu0 0.0
    %142 = vmatprep.subr.mxu0 0.0
    %143 = vmatpush1.msra.mxu0 0.0
    %144 = vmatprep.subr.mxu0 0.0
    %145 = vmatpush1.msra.mxu0 0.0
    %146 = vmatprep.subr.mxu0 0.0
    %147 = vmatpush1.msra.mxu0 0.0
    %148 = vmatprep.subr.mxu0 0.0
    %149 = vmatpush1.msra.mxu0 0.0
    %150 = vmatprep.subr.mxu0 0.0
    %151 = vmatpush1.msra.mxu0 0.0
    %152 = vmatprep.subr.mxu0 0.0
    %153 = vmatpush1.msra.mxu0 0.0
    %154 = vmatprep.subr.mxu0 0.0
    %155 = vmatpush1.msra.mxu0 0.0
    %156 = vmatprep.subr.mxu0 0.0
    %157 = vmatpush1.msra.mxu0 0.0
    %158 = vmatprep.subr.mxu0 0.0
    %159 = vmatpush1.msra.mxu0 0.0
    %160 = vmatprep.subr.mxu0 0.0
    %161 = vmatpush1.msra.mxu0 0.0
    %162 = vmatprep.subr.mxu0 0.0
    %163 = vmatpush1.msra.mxu0 0.0
    %164 = vmatprep.subr.mxu0 0.0
    %165 = vmatpush1.msra.mxu0 0.0
    %166 = vmatprep.subr.mxu0 0.0
    %167 = vmatpush1.msra.mxu0 0.0
    %168 = vmatprep.mubr.f32.mxu0 0.0
    %169 = vmatmul.mubr.f32.gmra.mrb[0].mxu0 %v80
    %v170 = vpop.f32.mrb[0].mxu0
    %v171 = vadd.f32 %v102, %v170
    %v172 = vpop.f32.mrb[0].mxu0
    %173 = vdwg.mxu0
    %v174 = vmax.f32 %v171, 0.0
    %v175 = vld [vmem:[#allocation7] sm:$0xff]
    %v176 = vld [vmem:[#allocation7 + $0x8] sm:$0xff]
    %v177 = vld [vmem:[#allocation7 + $0x10] sm:$0xff]
    %v178 = vld [vmem:[#allocation7 + $0x18] sm:$0xff]
    %v179 = vld [vmem:[#allocation7 + $0x20] sm:$0xff]
    %v180 = vld [vmem:[#allocation7 + $0x28] sm:$0xff]
    %v181 = vld [vmem:[#allocation7 + $0x30] sm:$0xff]
    %v182 = vld [vmem:[#allocation7 + $0x38] sm:$0xff]
    %v183 = vld [vmem:[#allocation7 + $0x40] sm:$0xff]
    %v184 = vld [vmem:[#allocation7 + $0x48] sm:$0xff]
    %v185 = vld [vmem:[#allocation7 + $0x50] sm:$0xff]
    %v186 = vld [vmem:[#allocation7 + $0x58] sm:$0xff]
    %v187 = vld [vmem:[#allocation7 + $0x60] sm:$0xff]
    %v188 = vld [vmem:[#allocation7 + $0x68] sm:$0xff]
    %v189 = vld [vmem:[#allocation7 + $0x70] sm:$0xff]
    %v190 = vld [vmem:[#allocation7 + $0x78] sm:$0xff]
    %v191 = vld [vmem:[%s5] sm:$0x1]
    %v193 = vlaneseq
    %v194 = vshrl.u32 %v193, 7
    %v195 = vsub.s32 0, %v194
    %v196 = vrot.slane %v191, %v195
    %198 = vmatprep.subr.mxu0 0.0
    %199 = vmatpush1.msra.mxu0 %v175
    %200 = vmatprep.subr.mxu0 0.0
    %201 = vmatpush1.msra.mxu0 %v176
    %202 = vmatprep.subr.mxu0 0.0
    %203 = vmatpush1.msra.mxu0 %v177
    %204 = vmatprep.subr.mxu0 0.0
    %205 = vmatpush1.msra.mxu0 %v178
    %206 = vmatprep.subr.mxu0 0.0
    %207 = vmatpush1.msra.mxu0 %v179
    %208 = vmatprep.subr.mxu0 0.0
    %209 = vmatpush1.msra.mxu0 %v180
    %210 = vmatprep.subr.mxu0 0.0
    %211 = vmatpush1.msra.mxu0 %v181
    %212 = vmatprep.subr.mxu0 0.0
    %213 = vmatpush1.msra.mxu0 %v182
    %214 = vmatprep.subr.mxu0 0.0
    %215 = vmatpush1.msra.mxu0 %v183
    %216 = vmatprep.subr.mxu0 0.0
    %217 = vmatpush1.msra.mxu0 %v184
    %218 = vmatprep.subr.mxu0 0.0
    %219 = vmatpush1.msra.mxu0 %v185
    %220 = vmatprep.subr.mxu0 0.0
    %221 = vmatpush1.msra.mxu0 %v186
    %222 = vmatprep.subr.mxu0 0.0
    %223 = vmatpush1.msra.mxu0 %v187
    %224 = vmatprep.subr.mxu0 0.0
    %225 = vmatpush1.msra.mxu0 %v188
    %226 = vmatprep.subr.mxu0 0.0
    %227 = vmatpush1.msra.mxu0 %v189
    %228 = vmatprep.subr.mxu0 0.0
    %229 = vmatpush1.msra.mxu0 %v190
    %230 = vmatprep.subr.mxu0 0.0
    %231 = vmatpush1.msra.mxu0 0.0
    %232 = vmatprep.subr.mxu0 0.0
    %233 = vmatpush1.msra.mxu0 0.0
    %234 = vmatprep.subr.mxu0 0.0
    %235 = vmatpush1.msra.mxu0 0.0
    %236 = vmatprep.subr.mxu0 0.0
    %237 = vmatpush1.msra.mxu0 0.0
    %238 = vmatprep.subr.mxu0 0.0
    %239 = vmatpush1.msra.mxu0 0.0
    %240 = vmatprep.subr.mxu0 0.0
    %241 = vmatpush1.msra.mxu0 0.0
    %242 = vmatprep.subr.mxu0 0.0
    %243 = vmatpush1.msra.mxu0 0.0
    %244 = vmatprep.subr.mxu0 0.0
    %245 = vmatpush1.msra.mxu0 0.0
    %246 = vmatprep.subr.mxu0 0.0
    %247 = vmatpush1.msra.mxu0 0.0
    %248 = vmatprep.subr.mxu0 0.0
    %249 = vmatpush1.msra.mxu0 0.0
    %250 = vmatprep.subr.mxu0 0.0
    %251 = vmatpush1.msra.mxu0 0.0
    %252 = vmatprep.subr.mxu0 0.0
    %253 = vmatpush1.msra.mxu0 0.0
    %254 = vmatprep.subr.mxu0 0.0
    %255 = vmatpush1.msra.mxu0 0.0
    %256 = vmatprep.subr.mxu0 0.0
    %257 = vmatpush1.msra.mxu0 0.0
    %258 = vmatprep.subr.mxu0 0.0
    %259 = vmatpush1.msra.mxu0 0.0
    %260 = vmatprep.subr.mxu0 0.0
    %261 = vmatpush1.msra.mxu0 0.0
    %262 = vmatprep.mubr.f32.mxu0 0.0
    %263 = vmatmul.mubr.f32.gmra.mrb[0].mxu0 %v174
    %v264 = vpop.f32.mrb[0].mxu0
    %v265 = vadd.f32 %v196, %v264
    %v266 = vpop.f32.mrb[0].mxu0
    %267 = vdwg.mxu0
    %v268 = vmax.f32 %v265, 0.0
    %v269 = vld [vmem:[#allocation8] sm:$0xff]
    %v270 = vld [vmem:[#allocation8 + $0x8] sm:$0xff]
    %v271 = vld [vmem:[#allocation8 + $0x10] sm:$0xff]
    %v272 = vld [vmem:[#allocation8 + $0x18] sm:$0xff]
    %v273 = vld [vmem:[#allocation8 + $0x20] sm:$0xff]
    %v274 = vld [vmem:[#allocation8 + $0x28] sm:$0xff]
    %v275 = vld [vmem:[#allocation8 + $0x30] sm:$0xff]
    %v276 = vld [vmem:[#allocation8 + $0x38] sm:$0xff]
    %v277 = vld [vmem:[#allocation8 + $0x40] sm:$0xff]
    %v278 = vld [vmem:[#allocation8 + $0x48] sm:$0xff]
    %v279 = vld [vmem:[#allocation8 + $0x50] sm:$0xff]
    %v280 = vld [vmem:[#allocation8 + $0x58] sm:$0xff]
    %v281 = vld [vmem:[#allocation8 + $0x60] sm:$0xff]
    %v282 = vld [vmem:[#allocation8 + $0x68] sm:$0xff]
    %v283 = vld [vmem:[#allocation8 + $0x70] sm:$0xff]
    %v284 = vld [vmem:[#allocation8 + $0x78] sm:$0xff]
    %v285 = vld [vmem:[%s6] sm:$0x1]
    %v287 = vlaneseq
    %v288 = vshrl.u32 %v287, 7
    %v289 = vsub.s32 0, %v288
    %v290 = vrot.slane %v285, %v289
    %292 = vmatprep.subr.mxu0 0.0
    %293 = vmatpush1.msra.mxu0 %v269
    %294 = vmatprep.subr.mxu0 0.0
    %295 = vmatpush1.msra.mxu0 %v270
    %296 = vmatprep.subr.mxu0 0.0
    %297 = vmatpush1.msra.mxu0 %v271
    %298 = vmatprep.subr.mxu0 0.0
    %299 = vmatpush1.msra.mxu0 %v272
    %300 = vmatprep.subr.mxu0 0.0
    %301 = vmatpush1.msra.mxu0 %v273
    %302 = vmatprep.subr.mxu0 0.0
    %303 = vmatpush1.msra.mxu0 %v274
    %304 = vmatprep.subr.mxu0 0.0
    %305 = vmatpush1.msra.mxu0 %v275
    %306 = vmatprep.subr.mxu0 0.0
    %307 = vmatpush1.msra.mxu0 %v276
    %308 = vmatprep.subr.mxu0 0.0
    %309 = vmatpush1.msra.mxu0 %v277
    %310 = vmatprep.subr.mxu0 0.0
    %311 = vmatpush1.msra.mxu0 %v278
    %312 = vmatprep.subr.mxu0 0.0
    %313 = vmatpush1.msra.mxu0 %v279
    %314 = vmatprep.subr.mxu0 0.0
    %315 = vmatpush1.msra.mxu0 %v280
    %316 = vmatprep.subr.mxu0 0.0
    %317 = vmatpush1.msra.mxu0 %v281
    %318 = vmatprep.subr.mxu0 0.0
    %319 = vmatpush1.msra.mxu0 %v282
    %320 = vmatprep.subr.mxu0 0.0
    %321 = vmatpush1.msra.mxu0 %v283
    %322 = vmatprep.subr.mxu0 0.0
    %323 = vmatpush1.msra.mxu0 %v284
    %324 = vmatprep.subr.mxu0 0.0
    %325 = vmatpush1.msra.mxu0 0.0
    %326 = vmatprep.subr.mxu0 0.0
    %327 = vmatpush1.msra.mxu0 0.0
    %328 = vmatprep.subr.mxu0 0.0
    %329 = vmatpush1.msra.mxu0 0.0
    %330 = vmatprep.subr.mxu0 0.0
    %331 = vmatpush1.msra.mxu0 0.0
    %332 = vmatprep.subr.mxu0 0.0
    %333 = vmatpush1.msra.mxu0 0.0
    %334 = vmatprep.subr.mxu0 0.0
    %335 = vmatpush1.msra.mxu0 0.0
    %336 = vmatprep.subr.mxu0 0.0
    %337 = vmatpush1.msra.mxu0 0.0
    %338 = vmatprep.subr.mxu0 0.0
    %339 = vmatpush1.msra.mxu0 0.0
    %340 = vmatprep.subr.mxu0 0.0
    %341 = vmatpush1.msra.mxu0 0.0
    %342 = vmatprep.subr.mxu0 0.0
    %343 = vmatpush1.msra.mxu0 0.0
    %344 = vmatprep.subr.mxu0 0.0
    %345 = vmatpush1.msra.mxu0 0.0
    %346 = vmatprep.subr.mxu0 0.0
    %347 = vmatpush1.msra.mxu0 0.0
    %348 = vmatprep.subr.mxu0 0.0
    %349 = vmatpush1.msra.mxu0 0.0
    %350 = vmatprep.subr.mxu0 0.0
    %351 = vmatpush1.msra.mxu0 0.0
    %352 = vmatprep.subr.mxu0 0.0
    %353 = vmatpush1.msra.mxu0 0.0
    %354 = vmatprep.subr.mxu0 0.0
    %355 = vmatpush1.msra.mxu0 0.0
    %356 = vmatprep.mubr.f32.mxu0 0.0
    %357 = vmatmul.mubr.f32.gmra.mrb[0].mxu0 %v268
    %v358 = vpop.f32.mrb[0].mxu0
    %v359 = vadd.f32 %v290, %v358
    %v360 = vpop.f32.mrb[0].mxu0
    %361 = vdwg.mxu0
    %362 = vst [vmem:[#allocation10] sm:$0xff] %v359
    // Predicated region
    $region46: #{tpu_custom_call.1} parent=1 // pred_check
      _
    $region47: #{tpu_custom_call.1} parent=1 // pred_check_branch
      %364 = sbr.rel (0) target = $region49
    $region48: #{tpu_custom_call.1} parent=1 // pred_region
      %s366 = ssub.s32 128, 128
      %367 = vsyncadd [#allocation4], %s366
      %s369 = sshll.u32 [#allocation10], 4
      %s370 = int_to_ptr.vmem [resolvable:$true] %s369
      %372 = dma.vmem_to_hbm [thread:$0]  %s370, 128, %s7, [#allocation4]
    $region49: #{tpu_custom_call.1} parent=1 // pred_fallthru
      _
    // Predicated region
    $region50: #{tpu_custom_call.1} parent=1 // pred_check
      _
    $region51: #{tpu_custom_call.1} parent=1 // pred_check_branch
      %374 = sbr.rel (0) target = $region53
    $region52: #{tpu_custom_call.1} parent=1 // pred_region
      %375 = dma.done [#allocation4], 128
    $region53: #{tpu_custom_call.1} parent=1 // pred_fallthru
      _
    %376 = vsyncpa [#allocation3], 1
    %377 = vsyncpa [#allocation6], 1
    %378 = vsyncpa [#allocation9], 1
    %379 = vsyncpa [#allocation4], 1

</llo_original>
